<compile_context>
chip_gen: v7x
topology: tpu7x:2x2x1
jax: 0.10.0
libtpu: 0.0.40
codegen_flags: <defaults>
</compile_context>

<pallas_src>
import functools

import jax
import jax.numpy as jnp
import numpy as np
from jax import lax
from jax.experimental import pallas as pl
from jax.experimental.pallas import tpu as pltpu


def _block_kernel(x_ref, wband_ref, pvec_ref, psum_ref, pbcast_ref, out_ref,
                  *, Bt, H, W, Cout, groups, eps):
    f32 = jnp.float32
    K = x_ref.shape[2]                     # (W+2)*Cin
    N = W * Cout
    gs = Cout // groups
    inv_cnt = 1.0 / float(H * W * gs)

    xp = x_ref[...]                        # (Bt, H+2, K), bf16, zero halo baked in
    pvec = pvec_ref[...]                   # (3, N) f32: [conv bias; gn weight; gn bias]
    bias, gamma, beta = pvec[0:1], pvec[1:2], pvec[2:3]

    # ---- 3x3 "same" conv as 3 banded MXU matmuls (one per ky) --------------
    # wband[ky][x*Cin+ci, w*Cout+co] = w_hwio[ky, x-w, ci, co] inside the band,
    # 0 outside, so each matmul folds the kx taps and the channel contraction
    # and lands directly in the lane-dense (Bt*H, W*Cout) layout.
    def band(ky):
        xs = xp[:, ky:ky + H, :].reshape(Bt * H, K)
        return jnp.dot(xs, wband_ref[ky], preferred_element_type=f32)

    acc = band(0) + bias
    acc = acc + band(1)
    acc = acc + band(2)                    # (Bt*H, N) f32
    acc3 = acc.reshape(Bt, H, N)           # (Bt, H, N)

    # ---- GroupNorm: two-pass per-image stats via small matmuls -------------
    colsum = jnp.sum(acc3, axis=1)                                             # (Bt, N)
    mean_g = jnp.dot(colsum, psum_ref[...],
                     preferred_element_type=f32) * inv_cnt                     # (Bt, G)
    mean = jnp.dot(mean_g, pbcast_ref[...], preferred_element_type=f32)        # (Bt, N)
    cent = acc3 - mean[:, None, :]                                             # (Bt, H, N)
    colsq = jnp.sum(cent * cent, axis=1)                                       # (Bt, N)
    var_g = jnp.dot(colsq, psum_ref[...],
                    preferred_element_type=f32) * inv_cnt                      # (Bt, G)
    inv_g = lax.rsqrt(var_g + eps)                                             # (Bt, G)
    inv = jnp.dot(inv_g, pbcast_ref[...], preferred_element_type=f32)          # (Bt, N)

    h = cent * (inv * gamma)[:, None, :] + beta                                # (Bt, H, N)

    # ---- Mish: x * tanh(softplus(x)), overflow-safe softplus ---------------
    sp = jnp.maximum(h, 0.0) + jnp.log1p(jnp.exp(-jnp.abs(h)))
    out_ref[...] = (h * jnp.tanh(sp)).astype(out_ref.dtype)   # full-lane store


def prepare_block_params(params, *, W, groups=8):
    """Params-only preprocessing (banding, tiling, stats matrices), done once."""
    Cout, Cin, KH, KW = params["w"].shape
    assert (KH, KW) == (3, 3)
    gs = Cout // groups
    f32 = jnp.float32

    # OIHW -> HWIO, then build the banded conv weights:
    # wband[ky, x, ci, w, co] = sum_kx sel[kx, x, w] * w_hwio[ky, kx, ci, co]
    w_hwio = jnp.transpose(params["w"], (2, 3, 1, 0)).astype(f32)      # (3, 3, Cin, Cout)
    kx = jnp.arange(3)[:, None, None]
    xg = jnp.arange(W + 2)[None, :, None]
    wg = jnp.arange(W)[None, None, :]
    sel = (xg == wg + kx).astype(f32)                                  # (kx, x, w)
    wband = jnp.einsum('kxw,ykio->yxiwo', sel, w_hwio,
                       precision=lax.Precision.HIGHEST)                # (ky, x, ci, w, co)
    wband = wband.reshape(3, (W + 2) * Cin, W * Cout).astype(jnp.bfloat16)

    # Per-channel vectors tiled into the lane-dense (W*Cout,) layout, merged
    # into a single (3, W*Cout) operand: [conv bias; gn weight; gn bias].
    pvec = jnp.stack([jnp.tile(params["b"].astype(f32), W),
                      jnp.tile(params["gn_w"].astype(f32), W),
                      jnp.tile(params["gn_b"].astype(f32), W)], axis=0)

    # Group-sum (W*Cout, G) and group-broadcast (G, W*Cout) matrices.
    grp = (jnp.arange(W * Cout) % Cout) // gs
    psum = (grp[:, None] == jnp.arange(groups)[None, :]).astype(f32)
    pbcast = psum.T
    return {"wband": wband, "pvec": pvec, "psum": psum, "pbcast": pbcast}


def _pick_bt(B, H, target_rows=128):
    """Largest divisor of B with Bt*H close to ~128 MXU rows."""
    bt = max(1, min(B, max(1, target_rows // max(H, 1))))
    while B % bt:
        bt -= 1
    return bt


@functools.partial(jax.jit, static_argnames=("groups", "eps"))
def block_pallas(x_nchw, prep, *, groups=8, eps=1e-5):
    B, Cin, H, W = x_nchw.shape
    N = prep["pvec"].shape[1]
    Cout = N // W
    G = prep["psum"].shape[1]
    assert G == groups

    # TODO(synk): in an NHWC end-to-end model these transposes/pads disappear;
    # they are kept only to preserve the PyTorch NCHW interface.
    x_nhwc = jnp.transpose(x_nchw, (0, 2, 3, 1))
    x_pad = jnp.pad(x_nhwc, ((0, 0), (1, 1), (1, 1), (0, 0)))          # zero halo in HBM
    x2d = x_pad.reshape(B, H + 2, (W + 2) * Cin).astype(jnp.bfloat16)  # lanes = (W+2)*Cin

    # Multiple images per grid step so the conv matmuls run at M = Bt*H.
    # (On v7x with larger B the grid still has >= 2 blocks for the 2 TCs.)
    Bt = _pick_bt(B, H)

    kernel = functools.partial(_block_kernel, Bt=Bt, H=H, W=W, Cout=Cout,
                               groups=G, eps=eps)

    in_specs = [
        pl.BlockSpec((Bt, H + 2, (W + 2) * Cin), lambda b: (b, 0, 0)),  # x (padded, bf16)
        pl.BlockSpec((3, (W + 2) * Cin, N), lambda b: (0, 0, 0)),       # banded conv weights
        pl.BlockSpec((3, N), lambda b: (0, 0)),                         # [bias; gamma; beta]
        pl.BlockSpec((N, G), lambda b: (0, 0)),                         # group-sum matrix
        pl.BlockSpec((G, N), lambda b: (0, 0)),                         # group-broadcast matrix
    ]
    out_spec = pl.BlockSpec((Bt, H, N), lambda b: (b, 0, 0))

    out2d = pl.pallas_call(
        kernel,
        out_shape=jax.ShapeDtypeStruct((B, H, N), jnp.float32),
        grid_spec=pltpu.PrefetchScalarGridSpec(
            num_scalar_prefetch=0,
            grid=(B // Bt,),
            in_specs=in_specs,
            out_specs=out_spec,
        ),
        compiler_params=pltpu.CompilerParams(
            dimension_semantics=("parallel",)),
    )(x2d, prep["wband"], prep["pvec"], prep["psum"], prep["pbcast"])

    out_nhwc = out2d.reshape(B, H, W, Cout)
    return jnp.transpose(out_nhwc, (0, 3, 1, 2))   # back to NCHW


def block_reference(x, params, *, groups=8, eps=1e-5):
    """Pure-JAX reference matching the PyTorch Block semantics (NCHW)."""
    out = lax.conv_general_dilated(
        x, params["w"], window_strides=(1, 1), padding=[(1, 1), (1, 1)],
        dimension_numbers=("NCHW", "OIHW", "NCHW"),
        precision=lax.Precision.HIGHEST)
    out = out + params["b"][None, :, None, None]

    B, C, H, W = out.shape
    g = out.reshape(B, groups, (C // groups) * H * W)
    mean = g.mean(axis=-1, keepdims=True)
    var = ((g - mean) ** 2).mean(axis=-1, keepdims=True)
    gn = ((g - mean) / jnp.sqrt(var + eps)).reshape(B, C, H, W)
    gn = gn * params["gn_w"][None, :, None, None] + params["gn_b"][None, :, None, None]

    return gn * jnp.tanh(jax.nn.softplus(gn))   # Mish


if __name__ == "__main__":
    B, dim, dim_out, H, W, groups = 2, 4, 16, 16, 16, 8
    f32 = jnp.float32
    key = jax.random.PRNGKey(0)
    ks = jax.random.split(key, 5)

    params = {
        "w": 0.2 * jax.random.normal(ks[0], (dim_out, dim, 3, 3), f32),
        "b": 0.1 * jax.random.normal(ks[1], (dim_out,), f32),
        "gn_w": 1.0 + 0.1 * jax.random.normal(ks[2], (dim_out,), f32),
        "gn_b": 0.1 * jax.random.normal(ks[3], (dim_out,), f32),
    }
    x = jax.random.normal(ks[4], (B, dim, H, W), f32)

    prep = prepare_block_params(params, W=W, groups=groups)   # hoisted, done once
    out = block_pallas(x, prep, groups=groups)
    out = jax.block_until_ready(out)

    ref = block_reference(x, params, groups=groups)
    assert out.shape == ref.shape == (B, dim_out, H, W)
    np.testing.assert_allclose(np.asarray(out), np.asarray(ref),
                               atol=2e-2, rtol=2e-2)
    print("KERNEL_OK")
</pallas_src>

<mosaic_0001>
module attributes {stable_mosaic.version = 11 : i64} {
  func.func @_block_kernel(%arg0: i32, %arg1: memref<2x18x72xbf16, #tpu.memory_space<vmem>>, %arg2: memref<3x72x256xbf16, #tpu.memory_space<vmem>>, %arg3: memref<3x256xf32, #tpu.memory_space<vmem>>, %arg4: memref<256x8xf32, #tpu.memory_space<vmem>>, %arg5: memref<8x256xf32, #tpu.memory_space<vmem>>, %arg6: memref<2x16x256xf32, #tpu.memory_space<vmem>>) attributes {dimension_semantics = [#tpu.dimension_semantics<parallel>], iteration_bounds = array<i64: 1>, scalar_prefetch = 0 : i64, scratch_operands = 0 : i64, tpu.core_type = #tpu.core_type<tc>, window_params = [{transform_indices = @transform_0, window_bounds = array<i64: 2, 18, 72>}, {pipeline_mode = #tpu.pipeline_mode<synchronous>, transform_indices = @transform_1, window_bounds = array<i64: 3, 72, 256>}, {pipeline_mode = #tpu.pipeline_mode<synchronous>, transform_indices = @transform_2, window_bounds = array<i64: 3, 256>}, {pipeline_mode = #tpu.pipeline_mode<synchronous>, transform_indices = @transform_3, window_bounds = array<i64: 256, 8>}, {pipeline_mode = #tpu.pipeline_mode<synchronous>, transform_indices = @transform_4, window_bounds = array<i64: 8, 256>}, {transform_indices = @transform_5, window_bounds = array<i64: 2, 16, 256>}]} {
    %c0 = arith.constant 0 : index
    %c0_0 = arith.constant 0 : index
    %c0_1 = arith.constant 0 : index
    %0 = vector.load %arg1[%c0, %c0_0, %c0_1] : memref<2x18x72xbf16, #tpu.memory_space<vmem>>, vector<2x18x72xbf16>
    %c0_2 = arith.constant 0 : index
    %c0_3 = arith.constant 0 : index
    %1 = vector.load %arg3[%c0_2, %c0_3] : memref<3x256xf32, #tpu.memory_space<vmem>>, vector<3x256xf32>
    %2 = vector.extract_strided_slice %1 {offsets = [0, 0], sizes = [1, 256], strides = [1, 1]} : vector<3x256xf32> to vector<1x256xf32>
    %3 = vector.extract_strided_slice %1 {offsets = [1, 0], sizes = [1, 256], strides = [1, 1]} : vector<3x256xf32> to vector<1x256xf32>
    %4 = vector.extract_strided_slice %1 {offsets = [2, 0], sizes = [1, 256], strides = [1, 1]} : vector<3x256xf32> to vector<1x256xf32>
    %5 = vector.extract_strided_slice %0 {offsets = [0, 0, 0], sizes = [2, 16, 72], strides = [1, 1, 1]} : vector<2x18x72xbf16> to vector<2x16x72xbf16>
    %6 = vector.shape_cast %5 : vector<2x16x72xbf16> to vector<32x72xbf16>
    %c0_4 = arith.constant 0 : index
    %c0_5 = arith.constant 0 : index
    %c0_6 = arith.constant 0 : index
    %7 = vector.load %arg2[%c0_4, %c0_5, %c0_6] : memref<3x72x256xbf16, #tpu.memory_space<vmem>>, vector<1x72x256xbf16>
    %8 = vector.shape_cast %7 : vector<1x72x256xbf16> to vector<72x256xbf16>
    %cst = arith.constant dense<0.000000e+00> : vector<32x256xf32>
    %9 = tpu.matmul %6, %8, %cst {dimension_numbers = #tpu.dot_dimension_numbers<[1], [0], [0], [1], [0, 0, 1, 1], [], []>} : vector<32x72xbf16>, vector<72x256xbf16>, vector<32x256xf32> -> vector<32x256xf32>
    %10 = vector.broadcast %2 : vector<1x256xf32> to vector<32x256xf32>
    %11 = arith.addf %9, %10 : vector<32x256xf32>
    %12 = vector.extract_strided_slice %0 {offsets = [0, 1, 0], sizes = [2, 16, 72], strides = [1, 1, 1]} : vector<2x18x72xbf16> to vector<2x16x72xbf16>
    %13 = vector.shape_cast %12 : vector<2x16x72xbf16> to vector<32x72xbf16>
    %c1 = arith.constant 1 : index
    %c0_7 = arith.constant 0 : index
    %c0_8 = arith.constant 0 : index
    %14 = vector.load %arg2[%c1, %c0_7, %c0_8] : memref<3x72x256xbf16, #tpu.memory_space<vmem>>, vector<1x72x256xbf16>
    %15 = vector.shape_cast %14 : vector<1x72x256xbf16> to vector<72x256xbf16>
    %cst_9 = arith.constant dense<0.000000e+00> : vector<32x256xf32>
    %16 = tpu.matmul %13, %15, %cst_9 {dimension_numbers = #tpu.dot_dimension_numbers<[1], [0], [0], [1], [0, 0, 1, 1], [], []>} : vector<32x72xbf16>, vector<72x256xbf16>, vector<32x256xf32> -> vector<32x256xf32>
    %17 = arith.addf %11, %16 : vector<32x256xf32>
    %18 = vector.extract_strided_slice %0 {offsets = [0, 2, 0], sizes = [2, 16, 72], strides = [1, 1, 1]} : vector<2x18x72xbf16> to vector<2x16x72xbf16>
    %19 = vector.shape_cast %18 : vector<2x16x72xbf16> to vector<32x72xbf16>
    %c2 = arith.constant 2 : index
    %c0_10 = arith.constant 0 : index
    %c0_11 = arith.constant 0 : index
    %20 = vector.load %arg2[%c2, %c0_10, %c0_11] : memref<3x72x256xbf16, #tpu.memory_space<vmem>>, vector<1x72x256xbf16>
    %21 = vector.shape_cast %20 : vector<1x72x256xbf16> to vector<72x256xbf16>
    %cst_12 = arith.constant dense<0.000000e+00> : vector<32x256xf32>
    %22 = tpu.matmul %19, %21, %cst_12 {dimension_numbers = #tpu.dot_dimension_numbers<[1], [0], [0], [1], [0, 0, 1, 1], [], []>} : vector<32x72xbf16>, vector<72x256xbf16>, vector<32x256xf32> -> vector<32x256xf32>
    %23 = arith.addf %17, %22 : vector<32x256xf32>
    %24 = vector.shape_cast %23 : vector<32x256xf32> to vector<2x16x256xf32>
    %cst_13 = arith.constant dense<0.000000e+00> : vector<2x256xf32>
    %25 = vector.multi_reduction <add>, %24, %cst_13 [1] : vector<2x16x256xf32> to vector<2x256xf32>
    %c0_14 = arith.constant 0 : index
    %c0_15 = arith.constant 0 : index
    %26 = vector.load %arg4[%c0_14, %c0_15] : memref<256x8xf32, #tpu.memory_space<vmem>>, vector<256x8xf32>
    %cst_16 = arith.constant dense<0.000000e+00> : vector<2x8xf32>
    %27 = tpu.matmul %25, %26, %cst_16 {dimension_numbers = #tpu.dot_dimension_numbers<[1], [0], [0], [1], [0, 0, 1, 1], [], []>} : vector<2x256xf32>, vector<256x8xf32>, vector<2x8xf32> -> vector<2x8xf32>
    %cst_17 = arith.constant 0.001953125 : f32
    %28 = vector.broadcast %cst_17 : f32 to vector<2x8xf32>
    %29 = arith.mulf %27, %28 : vector<2x8xf32>
    %c0_18 = arith.constant 0 : index
    %c0_19 = arith.constant 0 : index
    %30 = vector.load %arg5[%c0_18, %c0_19] : memref<8x256xf32, #tpu.memory_space<vmem>>, vector<8x256xf32>
    %cst_20 = arith.constant dense<0.000000e+00> : vector<2x256xf32>
    %31 = tpu.matmul %29, %30, %cst_20 {dimension_numbers = #tpu.dot_dimension_numbers<[1], [0], [0], [1], [0, 0, 1, 1], [], []>} : vector<2x8xf32>, vector<8x256xf32>, vector<2x256xf32> -> vector<2x256xf32>
    %32 = vector.shape_cast %31 : vector<2x256xf32> to vector<2x1x256xf32>
    %33 = vector.broadcast %32 : vector<2x1x256xf32> to vector<2x16x256xf32>
    %34 = arith.subf %24, %33 : vector<2x16x256xf32>
    %35 = arith.mulf %34, %34 : vector<2x16x256xf32>
    %cst_21 = arith.constant dense<0.000000e+00> : vector<2x256xf32>
    %36 = vector.multi_reduction <add>, %35, %cst_21 [1] : vector<2x16x256xf32> to vector<2x256xf32>
    %c0_22 = arith.constant 0 : index
    %c0_23 = arith.constant 0 : index
    %37 = vector.load %arg4[%c0_22, %c0_23] : memref<256x8xf32, #tpu.memory_space<vmem>>, vector<256x8xf32>
    %cst_24 = arith.constant dense<0.000000e+00> : vector<2x8xf32>
    %38 = tpu.matmul %36, %37, %cst_24 {dimension_numbers = #tpu.dot_dimension_numbers<[1], [0], [0], [1], [0, 0, 1, 1], [], []>} : vector<2x256xf32>, vector<256x8xf32>, vector<2x8xf32> -> vector<2x8xf32>
    %cst_25 = arith.constant 0.001953125 : f32
    %39 = vector.broadcast %cst_25 : f32 to vector<2x8xf32>
    %40 = arith.mulf %38, %39 : vector<2x8xf32>
    %cst_26 = arith.constant 9.99999974E-6 : f32
    %41 = vector.broadcast %cst_26 : f32 to vector<2x8xf32>
    %42 = arith.addf %40, %41 : vector<2x8xf32>
    %43 = math.rsqrt %42 : vector<2x8xf32>
    %c0_27 = arith.constant 0 : index
    %c0_28 = arith.constant 0 : index
    %44 = vector.load %arg5[%c0_27, %c0_28] : memref<8x256xf32, #tpu.memory_space<vmem>>, vector<8x256xf32>
    %cst_29 = arith.constant dense<0.000000e+00> : vector<2x256xf32>
    %45 = tpu.matmul %43, %44, %cst_29 {dimension_numbers = #tpu.dot_dimension_numbers<[1], [0], [0], [1], [0, 0, 1, 1], [], []>} : vector<2x8xf32>, vector<8x256xf32>, vector<2x256xf32> -> vector<2x256xf32>
    %46 = vector.broadcast %3 : vector<1x256xf32> to vector<2x256xf32>
    %47 = arith.mulf %45, %46 : vector<2x256xf32>
    %48 = vector.shape_cast %47 : vector<2x256xf32> to vector<2x1x256xf32>
    %49 = vector.broadcast %48 : vector<2x1x256xf32> to vector<2x16x256xf32>
    %50 = arith.mulf %34, %49 : vector<2x16x256xf32>
    %51 = vector.shape_cast %4 : vector<1x256xf32> to vector<1x1x256xf32>
    %52 = vector.broadcast %51 : vector<1x1x256xf32> to vector<2x16x256xf32>
    %53 = arith.addf %50, %52 : vector<2x16x256xf32>
    %cst_30 = arith.constant 0.000000e+00 : f32
    %54 = vector.broadcast %cst_30 : f32 to vector<2x16x256xf32>
    %55 = arith.maximumf %53, %54 : vector<2x16x256xf32>
    %56 = math.absf %53 : vector<2x16x256xf32>
    %cst_31 = arith.constant 0.000000e+00 : f32
    %57 = vector.broadcast %cst_31 : f32 to vector<2x16x256xf32>
    %58 = arith.subf %57, %56 : vector<2x16x256xf32>
    %59 = math.exp %58 : vector<2x16x256xf32>
    %60 = math.log1p %59 : vector<2x16x256xf32>
    %61 = arith.addf %55, %60 : vector<2x16x256xf32>
    %62 = math.tanh %61 : vector<2x16x256xf32>
    %63 = arith.mulf %53, %62 : vector<2x16x256xf32>
    %c0_32 = arith.constant 0 : index
    %c0_33 = arith.constant 0 : index
    %c0_34 = arith.constant 0 : index
    %64 = vector.load %arg6[%c0_32, %c0_33, %c0_34] : memref<2x16x256xf32, #tpu.memory_space<vmem>>, vector<2x16x256xf32>
    tpu.vector_store %arg6[%c0_32, %c0_33, %c0_34], %63 {strides = array<i32>} : memref<2x16x256xf32, #tpu.memory_space<vmem>>, vector<2x16x256xf32>,
    return
  }
  func.func @transform_0(%arg0: i32) -> (i32, i32, i32) {
    %c0_i32 = arith.constant 0 : i32
    %c0_i32_0 = arith.constant 0 : i32
    %c0_i32_1 = arith.constant 0 : i32
    return %arg0, %c0_i32, %c0_i32_0 : i32, i32, i32
  }
  func.func @transform_1(%arg0: i32) -> (i32, i32, i32) {
    %c0_i32 = arith.constant 0 : i32
    %c0_i32_0 = arith.constant 0 : i32
    %c0_i32_1 = arith.constant 0 : i32
    %c0_i32_2 = arith.constant 0 : i32
    return %c0_i32, %c0_i32_0, %c0_i32_1 : i32, i32, i32
  }
  func.func @transform_2(%arg0: i32) -> (i32, i32) {
    %c0_i32 = arith.constant 0 : i32
    %c0_i32_0 = arith.constant 0 : i32
    %c0_i32_1 = arith.constant 0 : i32
    return %c0_i32, %c0_i32_0 : i32, i32
  }
  func.func @transform_3(%arg0: i32) -> (i32, i32) {
    %c0_i32 = arith.constant 0 : i32
    %c0_i32_0 = arith.constant 0 : i32
    %c0_i32_1 = arith.constant 0 : i32
    return %c0_i32, %c0_i32_0 : i32, i32
  }
  func.func @transform_4(%arg0: i32) -> (i32, i32) {
    %c0_i32 = arith.constant 0 : i32
    %c0_i32_0 = arith.constant 0 : i32
    %c0_i32_1 = arith.constant 0 : i32
    return %c0_i32, %c0_i32_0 : i32, i32
  }
  func.func @transform_5(%arg0: i32) -> (i32, i32, i32) {
    %c0_i32 = arith.constant 0 : i32
    %c0_i32_0 = arith.constant 0 : i32
    %c0_i32_1 = arith.constant 0 : i32
    return %arg0, %c0_i32, %c0_i32_0 : i32, i32, i32
  }
}

</mosaic_0001>

<llo_original>
// kernel: block_pallas.1
$region0: #{block_pallas.1}
  #allocation0 [shape = 'u32[]', space=smem, size = 0x4, offset = 0x4, fixed_abs, tag = 'smem constant byte address 0x4 - core index']
  #allocation1 [shape = 'u32[144,128]{1,0:T(1,128)}', space=vmem, size = 0x12000, scoped, tag = 'internal scratch']
  %s0 = inlined_call_operand.vmem [shape: bf16[2,18,72], index: 0, kind: input, shape index: {}]
  %s1 = inlined_call_operand.vmem [shape: bf16[3,72,256], index: 1, kind: input, shape index: {}]
  %s2 = inlined_call_operand.vmem [shape: f32[3,256], index: 2, kind: input, shape index: {}]
  %s3 = inlined_call_operand.vmem [shape: f32[256,8], index: 3, kind: input, shape index: {}]
  %s4 = inlined_call_operand.vmem [shape: f32[8,256], index: 4, kind: input, shape index: {}]
  %s5 = inlined_call_operand.vmem [shape: f32[2,16,256], index: 5, kind: output, shape index: {}]
  %s6 = sld [smem:[#allocation0]]
  $region30: #{block_pallas.1} parent=0
    _
  %s8 = ssub.s32 1, %s6
  %s9 = scalar_select 0, %s8, %s6
  // Predicated region
  $region2: #{block_pallas.1} parent=0 // pred_check
    _
  $region3: #{block_pallas.1} parent=0 // pred_check_branch
    %11 = sbr.rel (0) target = $region5
  $region4: #{block_pallas.1} parent=0 // pred_region
    _
  $region5: #{block_pallas.1} parent=0 // pred_fallthru
    _
  // Predicated region
  $region6: #{block_pallas.1} parent=0 // pred_check
    _
  $region7: #{block_pallas.1} parent=0 // pred_check_branch
    %13 = sbr.rel (0) target = $region9
  $region8: #{block_pallas.1} parent=0 // pred_region
    _
  $region9: #{block_pallas.1} parent=0 // pred_fallthru
    _
  // Predicated region
  $region10: #{block_pallas.1} parent=0 // pred_check
    _
  $region11: #{block_pallas.1} parent=0 // pred_check_branch
    %15 = sbr.rel (0) target = $region13
  $region12: #{block_pallas.1} parent=0 // pred_region
    _
  $region13: #{block_pallas.1} parent=0 // pred_fallthru
    _
  // Predicated region
  $region14: #{block_pallas.1} parent=0 // pred_check
    _
  $region15: #{block_pallas.1} parent=0 // pred_check_branch
    %17 = sbr.rel (0) target = $region17
  $region16: #{block_pallas.1} parent=0 // pred_region
    _
  $region17: #{block_pallas.1} parent=0 // pred_fallthru
    _
  // Predicated region
  $region18: #{block_pallas.1} parent=0 // pred_check
    _
  $region19: #{block_pallas.1} parent=0 // pred_check_branch
    %19 = sbr.rel (0) target = $region21
  $region20: #{block_pallas.1} parent=0 // pred_region
    _
  $region21: #{block_pallas.1} parent=0 // pred_fallthru
    _
  %v21 = vld [vmem:[%s0] sm:$0xf]
  %v22 = vld [vmem:[%s0 + $0x4] sm:$0xf]
  %v23 = vld [vmem:[%s0 + $0x8] sm:$0x1]
  %v24 = vld [vmem:[%s0 + $0xc] sm:$0xf]
  %v25 = vld [vmem:[%s0 + $0x10] sm:$0xf]
  %v26 = vld [vmem:[%s0 + $0x14] sm:$0x1]
  %v27 = vld [vmem:[%s2] sm:$0x77]
  %v28 = vld [vmem:[%s1] sm:$0xff]
  %v29 = vld [vmem:[%s1 + $0x8] sm:$0xff]
  %v30 = vld [vmem:[%s1 + $0x10] sm:$0xff]
  %v31 = vld [vmem:[%s1 + $0x18] sm:$0xff]
  %v32 = vld [vmem:[%s1 + $0x20] sm:$0xff]
  %v33 = vld [vmem:[%s1 + $0x28] sm:$0xff]
  %v34 = vld [vmem:[%s1 + $0x30] sm:$0xff]
  %v35 = vld [vmem:[%s1 + $0x38] sm:$0xff]
  %v36 = vld [vmem:[%s1 + $0x40] sm:$0xff]
  %v38 = vlaneseq
  %v39 = vshrl.u32 %v38, 7
  %v40 = vsub.s32 0, %v39
  %v41 = vrot.slane %v27, %v40
  %v42 = vlaneseq
  %v43 = vshrl.u32 %v42, 7
  %v44 = vsub.s32 4, %v43
  %v45 = vrot.slane %v27, %v44
  %v48 = vlaneseq
  %v49 = vshrl.u32 %v48, 7
  %v50 = vsub.s32 0, %v49
  %v51 = vrot.slane %v41, %v50
  %v52 = vlaneseq
  %v53 = vshrl.u32 %v52, 7
  %v54 = vsub.s32 0, %v53
  %v55 = vrot.slane %v45, %v54
  %v60 = vunpack.c.l.b16 %v21
  %v61 = vunpack.c.l.b16 %v22
  %v62 = vunpack.c.l.b16 %v24
  %v63 = vunpack.c.l.b16 %v25
  %v64 = vpack.c.b16 %v61, %v60
  %v65 = vpack.c.b16 %v63, %v62
  %v75 = vunpack.c.l.b16 %v28
  %v76 = vunpack.c.h.b16 %v28
  %v77 = vunpack.c.l.b16 %v29
  %v78 = vunpack.c.h.b16 %v29
  %v79 = vunpack.c.l.b16 %v30
  %v80 = vunpack.c.h.b16 %v30
  %v81 = vunpack.c.l.b16 %v31
  %v82 = vunpack.c.h.b16 %v31
  %v83 = vunpack.c.l.b16 %v32
  %v84 = vunpack.c.h.b16 %v32
  %v85 = vunpack.c.l.b16 %v33
  %v86 = vunpack.c.h.b16 %v33
  %v87 = vunpack.c.l.b16 %v34
  %v88 = vunpack.c.h.b16 %v34
  %v89 = vunpack.c.l.b16 %v35
  %v90 = vunpack.c.h.b16 %v35
  %v91 = vunpack.c.l.b16 %v36
  %v92 = vunpack.c.h.b16 %v36
  %v93 = vpack.c.b16 %v77, %v75
  %v94 = vpack.c.b16 %v78, %v76
  %v95 = vpack.c.b16 %v81, %v79
  %v96 = vpack.c.b16 %v82, %v80
  %v97 = vpack.c.b16 %v85, %v83
  %v98 = vpack.c.b16 %v86, %v84
  %v99 = vpack.c.b16 %v89, %v87
  %v100 = vpack.c.b16 %v90, %v88
  %v101 = vpack.c.b16 %v91, %v91
  %v102 = vpack.c.b16 %v92, %v92
  %vm111 = vcmask 588800
  %v113 = vsel %vm111, %v64, 0
  %v116 = vsel %vm111, %v65, 0
  %vm118 = vcmask 1043456
  %v120 = vsel %vm118, %v101, 0
  %v123 = vsel %vm118, %v102, 0
  %125 = vmatprep.subr.bf16.mxu0 %v94
  %126 = vmatpush1.bf16.msra.mxu0 %v93
  %127 = vmatprep.subr.bf16.mxu0 %v96
  %128 = vmatpush1.bf16.msra.mxu0 %v95
  %129 = vmatprep.subr.bf16.mxu0 %v98
  %130 = vmatpush1.bf16.msra.mxu0 %v97
  %131 = vmatprep.subr.bf16.mxu0 %v100
  %132 = vmatpush1.bf16.msra.mxu0 %v99
  %133 = vmatprep.subr.bf16.mxu0 %v123
  %134 = vmatpush1.bf16.msra.mxu0 %v120
  %135 = vmatprep.subr.bf16.mxu0 0
  %136 = vmatpush1.bf16.msra.mxu0 0
  %137 = vmatprep.subr.bf16.mxu0 0
  %138 = vmatpush1.bf16.msra.mxu0 0
  %139 = vmatprep.subr.bf16.mxu0 0
  %140 = vmatpush1.bf16.msra.mxu0 0
  %141 = vmatprep.subr.bf16.mxu0 0
  %142 = vmatpush1.bf16.msra.mxu0 0
  %143 = vmatprep.subr.bf16.mxu0 0
  %144 = vmatpush1.bf16.msra.mxu0 0
  %145 = vmatprep.subr.bf16.mxu0 0
  %146 = vmatpush1.bf16.msra.mxu0 0
  %147 = vmatprep.subr.bf16.mxu0 0
  %148 = vmatpush1.bf16.msra.mxu0 0
  %149 = vmatprep.subr.bf16.mxu0 0
  %150 = vmatpush1.bf16.msra.mxu0 0
  %151 = vmatprep.subr.bf16.mxu0 0
  %152 = vmatpush1.bf16.msra.mxu0 0
  %153 = vmatprep.subr.bf16.mxu0 0
  %154 = vmatpush1.bf16.msra.mxu0 0
  %155 = vmatprep.subr.bf16.mxu0 0
  %156 = vmatpush1.bf16.msra.mxu0 0
  %157 = vmatprep.mubr.bf16.mxu0 0
  %158 = vmatmul.mubr.bf16.gmra.mrb[0].mxu0 %v113
  %v159 = vpop.f32.mrb[0].mxu0
  %v160 = vadd.f32 %v51, %v159
  %v161 = vpop.f32.mrb[0].mxu0
  %v162 = vadd.f32 %v55, %v161
  %v163 = vpop.f32.mrb[0].mxu0
  %v164 = vadd.f32 %v51, %v163
  %v165 = vpop.f32.mrb[0].mxu0
  %v166 = vadd.f32 %v55, %v165
  %167 = vmatprep.mubr.bf16.mxu0 0
  %168 = vmatmul.mubr.bf16.gmra.mrb[0].mxu0 %v116
  %v169 = vpop.f32.mrb[0].mxu0
  %v170 = vadd.f32 %v51, %v169
  %v171 = vpop.f32.mrb[0].mxu0
  %v172 = vadd.f32 %v55, %v171
  %v173 = vpop.f32.mrb[0].mxu0
  %v174 = vadd.f32 %v51, %v173
  %v175 = vpop.f32.mrb[0].mxu0
  %v176 = vadd.f32 %v55, %v175
  %177 = vdwg.mxu0
  %vm178 = vsmask.f32 3328
  %vm179 = vsmask.f32 7440
  %vm180 = vmor %vm178, %vm179
  %v182 = vshrl.u32 %v21, 16
  %v184 = vrot.slane %v182, 4
  %v185 = vshll.u32 %v21, 16
  %v187 = vrot.slane %v185, 5
  %v188 = vor.u32 %v184, %v187
  %v189 = vrot.slane %v188, 4
  %v191 = vshll.u32 %v22, 16
  %v193 = vrot.slane %v191, 5
  %v194 = vsel %vm180, %v189, %v193
  %v195 = vshrl.u32 %v22, 16
  %v197 = vrot.slane %v195, 4
  %v198 = vor.u32 %v197, %v193
  %v199 = vrot.slane %v198, 4
  %v201 = vshll.u32 %v23, 16
  %v203 = vrot.slane %v201, 5
  %v204 = vsel %vm180, %v199, %v203
  %v206 = vshrl.u32 %v24, 16
  %v208 = vrot.slane %v206, 4
  %v209 = vshll.u32 %v24, 16
  %v211 = vrot.slane %v209, 5
  %v212 = vor.u32 %v208, %v211
  %v213 = vrot.slane %v212, 4
  %v215 = vshll.u32 %v25, 16
  %v217 = vrot.slane %v215, 5
  %v218 = vsel %vm180, %v213, %v217
  %v219 = vshrl.u32 %v25, 16
  %v221 = vrot.slane %v219, 4
  %v222 = vor.u32 %v221, %v217
  %v223 = vrot.slane %v222, 4
  %v225 = vshll.u32 %v26, 16
  %v227 = vrot.slane %v225, 5
  %v228 = vsel %vm180, %v223, %v227
  %s229 = scalar_lea.vmem %s1, 72
  %v230 = vld [vmem:[%s229] sm:$0xff]
  %v231 = vld [vmem:[%s229 + $0x8] sm:$0xff]
  %v232 = vld [vmem:[%s229 + $0x10] sm:$0xff]
  %v233 = vld [vmem:[%s229 + $0x18] sm:$0xff]
  %v234 = vld [vmem:[%s229 + $0x20] sm:$0xff]
  %v235 = vld [vmem:[%s229 + $0x28] sm:$0xff]
  %v236 = vld [vmem:[%s229 + $0x30] sm:$0xff]
  %v237 = vld [vmem:[%s229 + $0x38] sm:$0xff]
  %v238 = vld [vmem:[%s229 + $0x40] sm:$0xff]
  %v239 = vunpack.c.l.b16 %v194
  %v240 = vunpack.c.l.b16 %v204
  %v241 = vunpack.c.l.b16 %v218
  %v242 = vunpack.c.l.b16 %v228
  %v243 = vpack.c.b16 %v240, %v239
  %v244 = vpack.c.b16 %v242, %v241
  %v254 = vunpack.c.l.b16 %v230
  %v255 = vunpack.c.h.b16 %v230
  %v256 = vunpack.c.l.b16 %v231
  %v257 = vunpack.c.h.b16 %v231
  %v258 = vunpack.c.l.b16 %v232
  %v259 = vunpack.c.h.b16 %v232
  %v260 = vunpack.c.l.b16 %v233
  %v261 = vunpack.c.h.b16 %v233
  %v262 = vunpack.c.l.b16 %v234
  %v263 = vunpack.c.h.b16 %v234
  %v264 = vunpack.c.l.b16 %v235
  %v265 = vunpack.c.h.b16 %v235
  %v266 = vunpack.c.l.b16 %v236
  %v267 = vunpack.c.h.b16 %v236
  %v268 = vunpack.c.l.b16 %v237
  %v269 = vunpack.c.h.b16 %v237
  %v270 = vunpack.c.l.b16 %v238
  %v271 = vunpack.c.h.b16 %v238
  %v272 = vpack.c.b16 %v256, %v254
  %v273 = vpack.c.b16 %v257, %v255
  %v274 = vpack.c.b16 %v260, %v258
  %v275 = vpack.c.b16 %v261, %v259
  %v276 = vpack.c.b16 %v264, %v262
  %v277 = vpack.c.b16 %v265, %v263
  %v278 = vpack.c.b16 %v268, %v266
  %v279 = vpack.c.b16 %v269, %v267
  %v280 = vpack.c.b16 %v270, %v270
  %v281 = vpack.c.b16 %v271, %v271
  %v291 = vsel %vm111, %v243, 0
  %v294 = vsel %vm111, %v244, 0
  %v297 = vsel %vm118, %v280, 0
  %v300 = vsel %vm118, %v281, 0
  %302 = vmatprep.subr.bf16.mxu0 %v273
  %303 = vmatpush1.bf16.msra.mxu0 %v272
  %304 = vmatprep.subr.bf16.mxu0 %v275
  %305 = vmatpush1.bf16.msra.mxu0 %v274
  %306 = vmatprep.subr.bf16.mxu0 %v277
  %307 = vmatpush1.bf16.msra.mxu0 %v276
  %308 = vmatprep.subr.bf16.mxu0 %v279
  %309 = vmatpush1.bf16.msra.mxu0 %v278
  %310 = vmatprep.subr.bf16.mxu0 %v300
  %311 = vmatpush1.bf16.msra.mxu0 %v297
  %312 = vmatprep.subr.bf16.mxu0 0
  %313 = vmatpush1.bf16.msra.mxu0 0
  %314 = vmatprep.subr.bf16.mxu0 0
  %315 = vmatpush1.bf16.msra.mxu0 0
  %316 = vmatprep.subr.bf16.mxu0 0
  %317 = vmatpush1.bf16.msra.mxu0 0
  %318 = vmatprep.subr.bf16.mxu0 0
  %319 = vmatpush1.bf16.msra.mxu0 0
  %320 = vmatprep.subr.bf16.mxu0 0
  %321 = vmatpush1.bf16.msra.mxu0 0
  %322 = vmatprep.subr.bf16.mxu0 0
  %323 = vmatpush1.bf16.msra.mxu0 0
  %324 = vmatprep.subr.bf16.mxu0 0
  %325 = vmatpush1.bf16.msra.mxu0 0
  %326 = vmatprep.subr.bf16.mxu0 0
  %327 = vmatpush1.bf16.msra.mxu0 0
  %328 = vmatprep.subr.bf16.mxu0 0
  %329 = vmatpush1.bf16.msra.mxu0 0
  %330 = vmatprep.subr.bf16.mxu0 0
  %331 = vmatpush1.bf16.msra.mxu0 0
  %332 = vmatprep.subr.bf16.mxu0 0
  %333 = vmatpush1.bf16.msra.mxu0 0
  %334 = vmatprep.mubr.bf16.mxu0 0
  %335 = vmatmul.mubr.bf16.gmra.mrb[0].mxu0 %v291
  %v336 = vpop.f32.mrb[0].mxu0
  %v337 = vadd.f32 0.0, %v336
  %v338 = vpop.f32.mrb[0].mxu0
  %v339 = vadd.f32 0.0, %v338
  %v340 = vpop.f32.mrb[0].mxu0
  %v341 = vadd.f32 0.0, %v340
  %v342 = vpop.f32.mrb[0].mxu0
  %v343 = vadd.f32 0.0, %v342
  %344 = vmatprep.mubr.bf16.mxu0 0
  %345 = vmatmul.mubr.bf16.gmra.mrb[0].mxu0 %v294
  %v346 = vpop.f32.mrb[0].mxu0
  %v347 = vadd.f32 0.0, %v346
  %v348 = vpop.f32.mrb[0].mxu0
  %v349 = vadd.f32 0.0, %v348
  %v350 = vpop.f32.mrb[0].mxu0
  %v351 = vadd.f32 0.0, %v350
  %v352 = vpop.f32.mrb[0].mxu0
  %v353 = vadd.f32 0.0, %v352
  %354 = vdwg.mxu0
  %v355 = vadd.f32 %v160, %v337
  %v356 = vadd.f32 %v162, %v339
  %v357 = vadd.f32 %v164, %v341
  %v358 = vadd.f32 %v166, %v343
  %v359 = vadd.f32 %v170, %v347
  %v360 = vadd.f32 %v172, %v349
  %v361 = vadd.f32 %v174, %v351
  %v362 = vadd.f32 %v176, %v353
  %vm365 = vcmask 1042432
  %vm366 = vcmask 1046532
  %vm367 = vmor %vm365, %vm366
  %v368 = vrot.slane %v21, 5
  %v369 = vrot.slane %v368, 4
  %v370 = vrot.slane %v22, 5
  %v371 = vsel %vm367, %v369, %v370
  %v372 = vrot.slane %v370, 4
  %v373 = vrot.slane %v23, 5
  %v374 = vsel %vm367, %v372, %v373
  %v375 = vrot.slane %v24, 5
  %v376 = vrot.slane %v375, 4
  %v377 = vrot.slane %v25, 5
  %v378 = vsel %vm367, %v376, %v377
  %v379 = vrot.slane %v377, 4
  %v380 = vrot.slane %v26, 5
  %v381 = vsel %vm367, %v379, %v380
  %s382 = scalar_lea.vmem %s1, 144
  %v383 = vld [vmem:[%s382] sm:$0xff]
  %v384 = vld [vmem:[%s382 + $0x8] sm:$0xff]
  %v385 = vld [vmem:[%s382 + $0x10] sm:$0xff]
  %v386 = vld [vmem:[%s382 + $0x18] sm:$0xff]
  %v387 = vld [vmem:[%s382 + $0x20] sm:$0xff]
  %v388 = vld [vmem:[%s382 + $0x28] sm:$0xff]
  %v389 = vld [vmem:[%s382 + $0x30] sm:$0xff]
  %v390 = vld [vmem:[%s382 + $0x38] sm:$0xff]
  %v391 = vld [vmem:[%s382 + $0x40] sm:$0xff]
  %v392 = vunpack.c.l.b16 %v371
  %v393 = vunpack.c.l.b16 %v374
  %v394 = vunpack.c.l.b16 %v378
  %v395 = vunpack.c.l.b16 %v381
  %v396 = vpack.c.b16 %v393, %v392
  %v397 = vpack.c.b16 %v395, %v394
  %v407 = vunpack.c.l.b16 %v383
  %v408 = vunpack.c.h.b16 %v383
  %v409 = vunpack.c.l.b16 %v384
  %v410 = vunpack.c.h.b16 %v384
  %v411 = vunpack.c.l.b16 %v385
  %v412 = vunpack.c.h.b16 %v385
  %v413 = vunpack.c.l.b16 %v386
  %v414 = vunpack.c.h.b16 %v386
  %v415 = vunpack.c.l.b16 %v387
  %v416 = vunpack.c.h.b16 %v387
  %v417 = vunpack.c.l.b16 %v388
  %v418 = vunpack.c.h.b16 %v388
  %v419 = vunpack.c.l.b16 %v389
  %v420 = vunpack.c.h.b16 %v389
  %v421 = vunpack.c.l.b16 %v390
  %v422 = vunpack.c.h.b16 %v390
  %v423 = vunpack.c.l.b16 %v391
  %v424 = vunpack.c.h.b16 %v391
  %v425 = vpack.c.b16 %v409, %v407
  %v426 = vpack.c.b16 %v410, %v408
  %v427 = vpack.c.b16 %v413, %v411
  %v428 = vpack.c.b16 %v414, %v412
  %v429 = vpack.c.b16 %v417, %v415
  %v430 = vpack.c.b16 %v418, %v416
  %v431 = vpack.c.b16 %v421, %v419
  %v432 = vpack.c.b16 %v422, %v420
  %v433 = vpack.c.b16 %v423, %v423
  %v434 = vpack.c.b16 %v424, %v424
  %v444 = vsel %vm111, %v396, 0
  %v447 = vsel %vm111, %v397, 0
  %v450 = vsel %vm118, %v433, 0
  %v453 = vsel %vm118, %v434, 0
  %455 = vmatprep.subr.bf16.mxu0 %v426
  %456 = vmatpush1.bf16.msra.mxu0 %v425
  %457 = vmatprep.subr.bf16.mxu0 %v428
  %458 = vmatpush1.bf16.msra.mxu0 %v427
  %459 = vmatprep.subr.bf16.mxu0 %v430
  %460 = vmatpush1.bf16.msra.mxu0 %v429
  %461 = vmatprep.subr.bf16.mxu0 %v432
  %462 = vmatpush1.bf16.msra.mxu0 %v431
  %463 = vmatprep.subr.bf16.mxu0 %v453
  %464 = vmatpush1.bf16.msra.mxu0 %v450
  %465 = vmatprep.subr.bf16.mxu0 0
  %466 = vmatpush1.bf16.msra.mxu0 0
  %467 = vmatprep.subr.bf16.mxu0 0
  %468 = vmatpush1.bf16.msra.mxu0 0
  %469 = vmatprep.subr.bf16.mxu0 0
  %470 = vmatpush1.bf16.msra.mxu0 0
  %471 = vmatprep.subr.bf16.mxu0 0
  %472 = vmatpush1.bf16.msra.mxu0 0
  %473 = vmatprep.subr.bf16.mxu0 0
  %474 = vmatpush1.bf16.msra.mxu0 0
  %475 = vmatprep.subr.bf16.mxu0 0
  %476 = vmatpush1.bf16.msra.mxu0 0
  %477 = vmatprep.subr.bf16.mxu0 0
  %478 = vmatpush1.bf16.msra.mxu0 0
  %479 = vmatprep.subr.bf16.mxu0 0
  %480 = vmatpush1.bf16.msra.mxu0 0
  %481 = vmatprep.subr.bf16.mxu0 0
  %482 = vmatpush1.bf16.msra.mxu0 0
  %483 = vmatprep.subr.bf16.mxu0 0
  %484 = vmatpush1.bf16.msra.mxu0 0
  %485 = vmatprep.subr.bf16.mxu0 0
  %486 = vmatpush1.bf16.msra.mxu0 0
  %487 = vmatprep.mubr.bf16.mxu0 0
  %488 = vmatmul.mubr.bf16.gmra.mrb[0].mxu0 %v444
  %v489 = vpop.f32.mrb[0].mxu0
  %v490 = vadd.f32 0.0, %v489
  %v491 = vpop.f32.mrb[0].mxu0
  %v492 = vadd.f32 0.0, %v491
  %v493 = vpop.f32.mrb[0].mxu0
  %v494 = vadd.f32 0.0, %v493
  %v495 = vpop.f32.mrb[0].mxu0
  %v496 = vadd.f32 0.0, %v495
  %497 = vmatprep.mubr.bf16.mxu0 0
  %498 = vmatmul.mubr.bf16.gmra.mrb[0].mxu0 %v447
  %v499 = vpop.f32.mrb[0].mxu0
  %v500 = vadd.f32 0.0, %v499
  %v501 = vpop.f32.mrb[0].mxu0
  %v502 = vadd.f32 0.0, %v501
  %v503 = vpop.f32.mrb[0].mxu0
  %v504 = vadd.f32 0.0, %v503
  %v505 = vpop.f32.mrb[0].mxu0
  %v506 = vadd.f32 0.0, %v505
  %507 = vdwg.mxu0
  %v508 = vadd.f32 %v355, %v490
  %v509 = vadd.f32 %v356, %v492
  %v510 = vadd.f32 %v357, %v494
  %v511 = vadd.f32 %v358, %v496
  %v512 = vadd.f32 %v359, %v500
  %v513 = vadd.f32 %v360, %v502
  %v514 = vadd.f32 %v361, %v504
  %v515 = vadd.f32 %v362, %v506
  %v516 = vadd.f32 %v508, %v510
  %v517 = vrot.slane %v516, 4
  %v518 = vadd.f32 %v516, %v517
  %v519 = vrot.slane %v518, 2
  %v520 = vadd.f32 %v518, %v519
  %v521 = vrot.slane %v520, 1
  %v522 = vadd.f32 %v520, %v521
  %v523 = vadd.f32 %v509, %v511
  %v524 = vrot.slane %v523, 4
  %v525 = vadd.f32 %v523, %v524
  %v526 = vrot.slane %v525, 2
  %v527 = vadd.f32 %v525, %v526
  %v528 = vrot.slane %v527, 1
  %v529 = vadd.f32 %v527, %v528
  %v530 = vadd.f32 %v512, %v514
  %v531 = vrot.slane %v530, 4
  %v532 = vadd.f32 %v530, %v531
  %v533 = vrot.slane %v532, 2
  %v534 = vadd.f32 %v532, %v533
  %v535 = vrot.slane %v534, 1
  %v536 = vadd.f32 %v534, %v535
  %v537 = vadd.f32 %v513, %v515
  %v538 = vrot.slane %v537, 4
  %v539 = vadd.f32 %v537, %v538
  %v540 = vrot.slane %v539, 2
  %v541 = vadd.f32 %v539, %v540
  %v542 = vrot.slane %v541, 1
  %v543 = vadd.f32 %v541, %v542
  %v544 = vld [vmem:[%s3] sm:$0xff]
  %v545 = vld [vmem:[%s3 + $0x8] sm:$0xff]
  %v546 = vld [vmem:[%s3 + $0x10] sm:$0xff]
  %v547 = vld [vmem:[%s3 + $0x18] sm:$0xff]
  %v548 = vld [vmem:[%s3 + $0x20] sm:$0xff]
  %v549 = vld [vmem:[%s3 + $0x28] sm:$0xff]
  %v550 = vld [vmem:[%s3 + $0x30] sm:$0xff]
  %v551 = vld [vmem:[%s3 + $0x38] sm:$0xff]
  %v552 = vld [vmem:[%s3 + $0x40] sm:$0xff]
  %v553 = vld [vmem:[%s3 + $0x48] sm:$0xff]
  %v554 = vld [vmem:[%s3 + $0x50] sm:$0xff]
  %v555 = vld [vmem:[%s3 + $0x58] sm:$0xff]
  %v556 = vld [vmem:[%s3 + $0x60] sm:$0xff]
  %v557 = vld [vmem:[%s3 + $0x68] sm:$0xff]
  %v558 = vld [vmem:[%s3 + $0x70] sm:$0xff]
  %v559 = vld [vmem:[%s3 + $0x78] sm:$0xff]
  %v560 = vld [vmem:[%s3 + $0x80] sm:$0xff]
  %v561 = vld [vmem:[%s3 + $0x88] sm:$0xff]
  %v562 = vld [vmem:[%s3 + $0x90] sm:$0xff]
  %v563 = vld [vmem:[%s3 + $0x98] sm:$0xff]
  %v564 = vld [vmem:[%s3 + $0xa0] sm:$0xff]
  %v565 = vld [vmem:[%s3 + $0xa8] sm:$0xff]
  %v566 = vld [vmem:[%s3 + $0xb0] sm:$0xff]
  %v567 = vld [vmem:[%s3 + $0xb8] sm:$0xff]
  %v568 = vld [vmem:[%s3 + $0xc0] sm:$0xff]
  %v569 = vld [vmem:[%s3 + $0xc8] sm:$0xff]
  %v570 = vld [vmem:[%s3 + $0xd0] sm:$0xff]
  %v571 = vld [vmem:[%s3 + $0xd8] sm:$0xff]
  %v572 = vld [vmem:[%s3 + $0xe0] sm:$0xff]
  %v573 = vld [vmem:[%s3 + $0xe8] sm:$0xff]
  %v574 = vld [vmem:[%s3 + $0xf0] sm:$0xff]
  %v575 = vld [vmem:[%s3 + $0xf8] sm:$0xff]
  %vm580 = vcmask 1041409
  %v581 = vsel %vm580, %v536, %v522
  %v582 = vsel %vm580, %v543, %v529
  %585 = vmatprep.subr.mxu0 0.0
  %586 = vmatpush1.msra.mxu0 %v544
  %587 = vmatprep.subr.mxu0 0.0
  %588 = vmatpush1.msra.mxu0 %v545
  %589 = vmatprep.subr.mxu0 0.0
  %590 = vmatpush1.msra.mxu0 %v546
  %591 = vmatprep.subr.mxu0 0.0
  %592 = vmatpush1.msra.mxu0 %v547
  %593 = vmatprep.subr.mxu0 0.0
  %594 = vmatpush1.msra.mxu0 %v548
  %595 = vmatprep.subr.mxu0 0.0
  %596 = vmatpush1.msra.mxu0 %v549
  %597 = vmatprep.subr.mxu0 0.0
  %598 = vmatpush1.msra.mxu0 %v550
  %599 = vmatprep.subr.mxu0 0.0
  %600 = vmatpush1.msra.mxu0 %v551
  %601 = vmatprep.subr.mxu0 0.0
  %602 = vmatpush1.msra.mxu0 %v552
  %603 = vmatprep.subr.mxu0 0.0
  %604 = vmatpush1.msra.mxu0 %v553
  %605 = vmatprep.subr.mxu0 0.0
  %606 = vmatpush1.msra.mxu0 %v554
  %607 = vmatprep.subr.mxu0 0.0
  %608 = vmatpush1.msra.mxu0 %v555
  %609 = vmatprep.subr.mxu0 0.0
  %610 = vmatpush1.msra.mxu0 %v556
  %611 = vmatprep.subr.mxu0 0.0
  %612 = vmatpush1.msra.mxu0 %v557
  %613 = vmatprep.subr.mxu0 0.0
  %614 = vmatpush1.msra.mxu0 %v558
  %615 = vmatprep.subr.mxu0 0.0
  %616 = vmatpush1.msra.mxu0 %v559
  %617 = vmatprep.subr.mxu0 0.0
  %618 = vmatpush1.msra.mxu0 %v560
  %619 = vmatprep.subr.mxu0 0.0
  %620 = vmatpush1.msra.mxu0 %v561
  %621 = vmatprep.subr.mxu0 0.0
  %622 = vmatpush1.msra.mxu0 %v562
  %623 = vmatprep.subr.mxu0 0.0
  %624 = vmatpush1.msra.mxu0 %v563
  %625 = vmatprep.subr.mxu0 0.0
  %626 = vmatpush1.msra.mxu0 %v564
  %627 = vmatprep.subr.mxu0 0.0
  %628 = vmatpush1.msra.mxu0 %v565
  %629 = vmatprep.subr.mxu0 0.0
  %630 = vmatpush1.msra.mxu0 %v566
  %631 = vmatprep.subr.mxu0 0.0
  %632 = vmatpush1.msra.mxu0 %v567
  %633 = vmatprep.subr.mxu0 0.0
  %634 = vmatpush1.msra.mxu0 %v568
  %635 = vmatprep.subr.mxu0 0.0
  %636 = vmatpush1.msra.mxu0 %v569
  %637 = vmatprep.subr.mxu0 0.0
  %638 = vmatpush1.msra.mxu0 %v570
  %639 = vmatprep.subr.mxu0 0.0
  %640 = vmatpush1.msra.mxu0 %v571
  %641 = vmatprep.subr.mxu0 0.0
  %642 = vmatpush1.msra.mxu0 %v572
  %643 = vmatprep.subr.mxu0 0.0
  %644 = vmatpush1.msra.mxu0 %v573
  %645 = vmatprep.subr.mxu0 0.0
  %646 = vmatpush1.msra.mxu0 %v574
  %647 = vmatprep.subr.mxu0 0.0
  %648 = vmatpush1.msra.mxu0 %v575
  %649 = vmatprep.mubr.f32.mxu0 %v582
  %650 = vmatmul.mubr.f32.gmra.mrb[0].mxu0 %v581
  %v651 = vpop.f32.mrb[0].mxu0
  %v652 = vadd.f32 0.0, %v651
  %v653 = vpop.f32.mrb[0].mxu0
  %654 = vdwg.mxu0
  %v655 = vmul.f32 %v652, 0.001953125
  %v656 = vld [vmem:[%s4] sm:$0xff]
  %v657 = vld [vmem:[%s4 + $0x8] sm:$0xff]
  %vm658 = vcmask 64512
  %v660 = vsel %vm658, %v655, 0
  %662 = vmatprep.subr.mxu0 %v657
  %663 = vmatpush1.msra.mxu0 %v656
  %664 = vmatprep.subr.mxu0 0.0
  %665 = vmatpush1.msra.mxu0 0.0
  %666 = vmatprep.subr.mxu0 0.0
  %667 = vmatpush1.msra.mxu0 0.0
  %668 = vmatprep.subr.mxu0 0.0
  %669 = vmatpush1.msra.mxu0 0.0
  %670 = vmatprep.subr.mxu0 0.0
  %671 = vmatpush1.msra.mxu0 0.0
  %672 = vmatprep.subr.mxu0 0.0
  %673 = vmatpush1.msra.mxu0 0.0
  %674 = vmatprep.subr.mxu0 0.0
  %675 = vmatpush1.msra.mxu0 0.0
  %676 = vmatprep.subr.mxu0 0.0
  %677 = vmatpush1.msra.mxu0 0.0
  %678 = vmatprep.subr.mxu0 0.0
  %679 = vmatpush1.msra.mxu0 0.0
  %680 = vmatprep.subr.mxu0 0.0
  %681 = vmatpush1.msra.mxu0 0.0
  %682 = vmatprep.subr.mxu0 0.0
  %683 = vmatpush1.msra.mxu0 0.0
  %684 = vmatprep.subr.mxu0 0.0
  %685 = vmatpush1.msra.mxu0 0.0
  %686 = vmatprep.subr.mxu0 0.0
  %687 = vmatpush1.msra.mxu0 0.0
  %688 = vmatprep.subr.mxu0 0.0
  %689 = vmatpush1.msra.mxu0 0.0
  %690 = vmatprep.subr.mxu0 0.0
  %691 = vmatpush1.msra.mxu0 0.0
  %692 = vmatprep.subr.mxu0 0.0
  %693 = vmatpush1.msra.mxu0 0.0
  %694 = vmatprep.subr.mxu0 0.0
  %695 = vmatpush1.msra.mxu0 0.0
  %696 = vmatprep.subr.mxu0 0.0
  %697 = vmatpush1.msra.mxu0 0.0
  %698 = vmatprep.subr.mxu0 0.0
  %699 = vmatpush1.msra.mxu0 0.0
  %700 = vmatprep.subr.mxu0 0.0
  %701 = vmatpush1.msra.mxu0 0.0
  %702 = vmatprep.subr.mxu0 0.0
  %703 = vmatpush1.msra.mxu0 0.0
  %704 = vmatprep.subr.mxu0 0.0
  %705 = vmatpush1.msra.mxu0 0.0
  %706 = vmatprep.subr.mxu0 0.0
  %707 = vmatpush1.msra.mxu0 0.0
  %708 = vmatprep.subr.mxu0 0.0
  %709 = vmatpush1.msra.mxu0 0.0
  %710 = vmatprep.subr.mxu0 0.0
  %711 = vmatpush1.msra.mxu0 0.0
  %712 = vmatprep.subr.mxu0 0.0
  %713 = vmatpush1.msra.mxu0 0.0
  %714 = vmatprep.subr.mxu0 0.0
  %715 = vmatpush1.msra.mxu0 0.0
  %716 = vmatprep.subr.mxu0 0.0
  %717 = vmatpush1.msra.mxu0 0.0
  %718 = vmatprep.subr.mxu0 0.0
  %719 = vmatpush1.msra.mxu0 0.0
  %720 = vmatprep.subr.mxu0 0.0
  %721 = vmatpush1.msra.mxu0 0.0
  %722 = vmatprep.subr.mxu0 0.0
  %723 = vmatpush1.msra.mxu0 0.0
  %724 = vmatprep.subr.mxu0 0.0
  %725 = vmatpush1.msra.mxu0 0.0
  %726 = vmatprep.mubr.f32.mxu0 0.0
  %727 = vmatmul.mubr.f32.gmra.mrb[0].mxu0 %v660
  %v728 = vpop.f32.mrb[0].mxu0
  %v729 = vadd.f32 0.0, %v728
  %v730 = vpop.f32.mrb[0].mxu0
  %v731 = vadd.f32 0.0, %v730
  %732 = vdwg.mxu0
  %v735 = vcombine.low %v729, %v731
  %v737 = vunpack.c.l.s4 1966171168
  %v738 = vunpack.c.0.s8 %v737
  %v739 = vlaneseq
  %v740 = vshrl.u32 %v739, 7
  %v741 = vsub.s32 %v738, %v740
  %v742 = vrot.slane %v735, %v741
  %v743 = vcombine.high %v742, %v742
  %v745 = vunpack.c.l.s4 1966171168
  %v746 = vunpack.c.0.s8 %v745
  %v747 = vlaneseq
  %v748 = vshrl.u32 %v747, 7
  %v749 = vsub.s32 %v746, %v748
  %v750 = vrot.slane %v742, %v749
  %v752 = vunpack.c.l.s4 1966171168
  %v753 = vunpack.c.0.s8 %v752
  %v754 = vlaneseq
  %v755 = vshrl.u32 %v754, 7
  %v756 = vsub.s32 %v753, %v755
  %v757 = vrot.slane %v743, %v756
  %v758 = vlaneseq
  %v759 = vshrl.u32 %v758, 7
  %v760 = vsub.s32 0, %v759
  %v761 = vrot.slane %v750, %v760
  %v762 = vlaneseq
  %v763 = vshrl.u32 %v762, 7
  %v764 = vsub.s32 1, %v763
  %v765 = vrot.slane %v750, %v764
  %v766 = vlaneseq
  %v767 = vshrl.u32 %v766, 7
  %v768 = vsub.s32 0, %v767
  %v769 = vrot.slane %v757, %v768
  %v770 = vlaneseq
  %v771 = vshrl.u32 %v770, 7
  %v772 = vsub.s32 1, %v771
  %v773 = vrot.slane %v757, %v772
  %v778 = vsub.f32 %v508, %v761
  %v779 = vsub.f32 %v509, %v765
  %v780 = vsub.f32 %v510, %v761
  %v781 = vsub.f32 %v511, %v765
  %v782 = vsub.f32 %v512, %v769
  %v783 = vsub.f32 %v513, %v773
  %v784 = vsub.f32 %v514, %v769
  %v785 = vsub.f32 %v515, %v773
  %v786 = vmul.f32 %v778, %v778
  %v787 = vmul.f32 %v779, %v779
  %v788 = vmul.f32 %v780, %v780
  %v789 = vmul.f32 %v781, %v781
  %v790 = vmul.f32 %v782, %v782
  %v791 = vmul.f32 %v783, %v783
  %v792 = vmul.f32 %v784, %v784
  %v793 = vmul.f32 %v785, %v785
  %v794 = vadd.f32 %v786, %v788
  %v795 = vrot.slane %v794, 4
  %v796 = vadd.f32 %v794, %v795
  %v797 = vrot.slane %v796, 2
  %v798 = vadd.f32 %v796, %v797
  %v799 = vrot.slane %v798, 1
  %v800 = vadd.f32 %v798, %v799
  %v801 = vadd.f32 %v787, %v789
  %v802 = vrot.slane %v801, 4
  %v803 = vadd.f32 %v801, %v802
  %v804 = vrot.slane %v803, 2
  %v805 = vadd.f32 %v803, %v804
  %v806 = vrot.slane %v805, 1
  %v807 = vadd.f32 %v805, %v806
  %v808 = vadd.f32 %v790, %v792
  %v809 = vrot.slane %v808, 4
  %v810 = vadd.f32 %v808, %v809
  %v811 = vrot.slane %v810, 2
  %v812 = vadd.f32 %v810, %v811
  %v813 = vrot.slane %v812, 1
  %v814 = vadd.f32 %v812, %v813
  %v815 = vadd.f32 %v791, %v793
  %v816 = vrot.slane %v815, 4
  %v817 = vadd.f32 %v815, %v816
  %v818 = vrot.slane %v817, 2
  %v819 = vadd.f32 %v817, %v818
  %v820 = vrot.slane %v819, 1
  %v821 = vadd.f32 %v819, %v820
  %v826 = vsel %vm580, %v814, %v800
  %v827 = vsel %vm580, %v821, %v807
  %830 = vmatprep.subr.mxu0 0.0
  %831 = vmatpush1.msra.mxu0 %v544
  %832 = vmatprep.subr.mxu0 0.0
  %833 = vmatpush1.msra.mxu0 %v545
  %834 = vmatprep.subr.mxu0 0.0
  %835 = vmatpush1.msra.mxu0 %v546
  %836 = vmatprep.subr.mxu0 0.0
  %837 = vmatpush1.msra.mxu0 %v547
  %838 = vmatprep.subr.mxu0 0.0
  %839 = vmatpush1.msra.mxu0 %v548
  %840 = vmatprep.subr.mxu0 0.0
  %841 = vmatpush1.msra.mxu0 %v549
  %842 = vmatprep.subr.mxu0 0.0
  %843 = vmatpush1.msra.mxu0 %v550
  %844 = vmatprep.subr.mxu0 0.0
  %845 = vmatpush1.msra.mxu0 %v551
  %846 = vmatprep.subr.mxu0 0.0
  %847 = vmatpush1.msra.mxu0 %v552
  %848 = vmatprep.subr.mxu0 0.0
  %849 = vmatpush1.msra.mxu0 %v553
  %850 = vmatprep.subr.mxu0 0.0
  %851 = vmatpush1.msra.mxu0 %v554
  %852 = vmatprep.subr.mxu0 0.0
  %853 = vmatpush1.msra.mxu0 %v555
  %854 = vmatprep.subr.mxu0 0.0
  %855 = vmatpush1.msra.mxu0 %v556
  %856 = vmatprep.subr.mxu0 0.0
  %857 = vmatpush1.msra.mxu0 %v557
  %858 = vmatprep.subr.mxu0 0.0
  %859 = vmatpush1.msra.mxu0 %v558
  %860 = vmatprep.subr.mxu0 0.0
  %861 = vmatpush1.msra.mxu0 %v559
  %862 = vmatprep.subr.mxu0 0.0
  %863 = vmatpush1.msra.mxu0 %v560
  %864 = vmatprep.subr.mxu0 0.0
  %865 = vmatpush1.msra.mxu0 %v561
  %866 = vmatprep.subr.mxu0 0.0
  %867 = vmatpush1.msra.mxu0 %v562
  %868 = vmatprep.subr.mxu0 0.0
  %869 = vmatpush1.msra.mxu0 %v563
  %870 = vmatprep.subr.mxu0 0.0
  %871 = vmatpush1.msra.mxu0 %v564
  %872 = vmatprep.subr.mxu0 0.0
  %873 = vmatpush1.msra.mxu0 %v565
  %874 = vmatprep.subr.mxu0 0.0
  %875 = vmatpush1.msra.mxu0 %v566
  %876 = vmatprep.subr.mxu0 0.0
  %877 = vmatpush1.msra.mxu0 %v567
  %878 = vmatprep.subr.mxu0 0.0
  %879 = vmatpush1.msra.mxu0 %v568
  %880 = vmatprep.subr.mxu0 0.0
  %881 = vmatpush1.msra.mxu0 %v569
  %882 = vmatprep.subr.mxu0 0.0
  %883 = vmatpush1.msra.mxu0 %v570
  %884 = vmatprep.subr.mxu0 0.0
  %885 = vmatpush1.msra.mxu0 %v571
  %886 = vmatprep.subr.mxu0 0.0
  %887 = vmatpush1.msra.mxu0 %v572
  %888 = vmatprep.subr.mxu0 0.0
  %889 = vmatpush1.msra.mxu0 %v573
  %890 = vmatprep.subr.mxu0 0.0
  %891 = vmatpush1.msra.mxu0 %v574
  %892 = vmatprep.subr.mxu0 0.0
  %893 = vmatpush1.msra.mxu0 %v575
  %894 = vmatprep.mubr.f32.mxu0 %v827
  %895 = vmatmul.mubr.f32.gmra.mrb[0].mxu0 %v826
  %v896 = vpop.f32.mrb[0].mxu0
  %v897 = vadd.f32 0.0, %v896
  %v898 = vpop.f32.mrb[0].mxu0
  %899 = vdwg.mxu0
  %v900 = vmul.f32 %v897, 0.001953125
  %v901 = vadd.f32 %v900, 1e-05
  %v902 = vrsqrt.pop %v901
  %v904 = vsel %vm658, %v902, 0
  %906 = vmatprep.subr.mxu0 %v657
  %907 = vmatpush1.msra.mxu0 %v656
  %908 = vmatprep.subr.mxu0 0.0
  %909 = vmatpush1.msra.mxu0 0.0
  %910 = vmatprep.subr.mxu0 0.0
  %911 = vmatpush1.msra.mxu0 0.0
  %912 = vmatprep.subr.mxu0 0.0
  %913 = vmatpush1.msra.mxu0 0.0
  %914 = vmatprep.subr.mxu0 0.0
  %915 = vmatpush1.msra.mxu0 0.0
  %916 = vmatprep.subr.mxu0 0.0
  %917 = vmatpush1.msra.mxu0 0.0
  %918 = vmatprep.subr.mxu0 0.0
  %919 = vmatpush1.msra.mxu0 0.0
  %920 = vmatprep.subr.mxu0 0.0
  %921 = vmatpush1.msra.mxu0 0.0
  %922 = vmatprep.subr.mxu0 0.0
  %923 = vmatpush1.msra.mxu0 0.0
  %924 = vmatprep.subr.mxu0 0.0
  %925 = vmatpush1.msra.mxu0 0.0
  %926 = vmatprep.subr.mxu0 0.0
  %927 = vmatpush1.msra.mxu0 0.0
  %928 = vmatprep.subr.mxu0 0.0
  %929 = vmatpush1.msra.mxu0 0.0
  %930 = vmatprep.subr.mxu0 0.0
  %931 = vmatpush1.msra.mxu0 0.0
  %932 = vmatprep.subr.mxu0 0.0
  %933 = vmatpush1.msra.mxu0 0.0
  %934 = vmatprep.subr.mxu0 0.0
  %935 = vmatpush1.msra.mxu0 0.0
  %936 = vmatprep.subr.mxu0 0.0
  %937 = vmatpush1.msra.mxu0 0.0
  %938 = vmatprep.subr.mxu0 0.0
  %939 = vmatpush1.msra.mxu0 0.0
  %940 = vmatprep.subr.mxu0 0.0
  %941 = vmatpush1.msra.mxu0 0.0
  %942 = vmatprep.subr.mxu0 0.0
  %943 = vmatpush1.msra.mxu0 0.0
  %944 = vmatprep.subr.mxu0 0.0
  %945 = vmatpush1.msra.mxu0 0.0
  %946 = vmatprep.subr.mxu0 0.0
  %947 = vmatpush1.msra.mxu0 0.0
  %948 = vmatprep.subr.mxu0 0.0
  %949 = vmatpush1.msra.mxu0 0.0
  %950 = vmatprep.subr.mxu0 0.0
  %951 = vmatpush1.msra.mxu0 0.0
  %952 = vmatprep.subr.mxu0 0.0
  %953 = vmatpush1.msra.mxu0 0.0
  %954 = vmatprep.subr.mxu0 0.0
  %955 = vmatpush1.msra.mxu0 0.0
  %956 = vmatprep.subr.mxu0 0.0
  %957 = vmatpush1.msra.mxu0 0.0
  %958 = vmatprep.subr.mxu0 0.0
  %959 = vmatpush1.msra.mxu0 0.0
  %960 = vmatprep.subr.mxu0 0.0
  %961 = vmatpush1.msra.mxu0 0.0
  %962 = vmatprep.subr.mxu0 0.0
  %963 = vmatpush1.msra.mxu0 0.0
  %964 = vmatprep.subr.mxu0 0.0
  %965 = vmatpush1.msra.mxu0 0.0
  %966 = vmatprep.subr.mxu0 0.0
  %967 = vmatpush1.msra.mxu0 0.0
  %968 = vmatprep.subr.mxu0 0.0
  %969 = vmatpush1.msra.mxu0 0.0
  %970 = vmatprep.mubr.f32.mxu0 0.0
  %971 = vmatmul.mubr.f32.gmra.mrb[0].mxu0 %v904
  %v972 = vpop.f32.mrb[0].mxu0
  %v973 = vadd.f32 0.0, %v972
  %v974 = vpop.f32.mrb[0].mxu0
  %v975 = vadd.f32 0.0, %v974
  %976 = vdwg.mxu0
  %v977 = vlaneseq
  %v978 = vshrl.u32 %v977, 7
  %v979 = vsub.s32 1, %v978
  %v980 = vrot.slane %v27, %v979
  %v981 = vlaneseq
  %v982 = vshrl.u32 %v981, 7
  %v983 = vsub.s32 5, %v982
  %v984 = vrot.slane %v27, %v983
  %v987 = vlaneseq
  %v988 = vshrl.u32 %v987, 7
  %v989 = vsub.s32 1, %v988
  %v990 = vrot.slane %v980, %v989
  %v991 = vlaneseq
  %v992 = vshrl.u32 %v991, 7
  %v993 = vsub.s32 1, %v992
  %v994 = vrot.slane %v984, %v993
  %v995 = vmul.f32 %v973, %v990
  %v996 = vmul.f32 %v975, %v994
  %v999 = vcombine.low %v995, %v996
  %v1001 = vunpack.c.l.s4 1966171168
  %v1002 = vunpack.c.0.s8 %v1001
  %v1003 = vlaneseq
  %v1004 = vshrl.u32 %v1003, 7
  %v1005 = vsub.s32 %v1002, %v1004
  %v1006 = vrot.slane %v999, %v1005
  %v1007 = vcombine.high %v1006, %v1006
  %v1009 = vunpack.c.l.s4 1966171168
  %v1010 = vunpack.c.0.s8 %v1009
  %v1011 = vlaneseq
  %v1012 = vshrl.u32 %v1011, 7
  %v1013 = vsub.s32 %v1010, %v1012
  %v1014 = vrot.slane %v1006, %v1013
  %v1016 = vunpack.c.l.s4 1966171168
  %v1017 = vunpack.c.0.s8 %v1016
  %v1018 = vlaneseq
  %v1019 = vshrl.u32 %v1018, 7
  %v1020 = vsub.s32 %v1017, %v1019
  %v1021 = vrot.slane %v1007, %v1020
  %v1022 = vlaneseq
  %v1023 = vshrl.u32 %v1022, 7
  %v1024 = vsub.s32 0, %v1023
  %v1025 = vrot.slane %v1014, %v1024
  %v1026 = vlaneseq
  %v1027 = vshrl.u32 %v1026, 7
  %v1028 = vsub.s32 1, %v1027
  %v1029 = vrot.slane %v1014, %v1028
  %v1030 = vlaneseq
  %v1031 = vshrl.u32 %v1030, 7
  %v1032 = vsub.s32 0, %v1031
  %v1033 = vrot.slane %v1021, %v1032
  %v1034 = vlaneseq
  %v1035 = vshrl.u32 %v1034, 7
  %v1036 = vsub.s32 1, %v1035
  %v1037 = vrot.slane %v1021, %v1036
  %v1042 = vmul.f32 %v778, %v1025
  %v1043 = vmul.f32 %v779, %v1029
  %v1044 = vmul.f32 %v780, %v1025
  %v1045 = vmul.f32 %v781, %v1029
  %v1046 = vmul.f32 %v782, %v1033
  %v1047 = vmul.f32 %v783, %v1037
  %v1048 = vmul.f32 %v784, %v1033
  %v1049 = vmul.f32 %v785, %v1037
  %v1050 = vlaneseq
  %v1051 = vshrl.u32 %v1050, 7
  %v1052 = vsub.s32 2, %v1051
  %v1053 = vrot.slane %v27, %v1052
  %v1054 = vlaneseq
  %v1055 = vshrl.u32 %v1054, 7
  %v1056 = vsub.s32 6, %v1055
  %v1057 = vrot.slane %v27, %v1056
  %v1060 = vlaneseq
  %v1061 = vshrl.u32 %v1060, 7
  %v1062 = vsub.s32 2, %v1061
  %v1063 = vrot.slane %v1053, %v1062
  %v1064 = vlaneseq
  %v1065 = vshrl.u32 %v1064, 7
  %v1066 = vsub.s32 2, %v1065
  %v1067 = vrot.slane %v1057, %v1066
  %v1068 = vadd.f32 %v1042, %v1063
  %v1069 = vadd.f32 %v1043, %v1067
  %v1070 = vadd.f32 %v1044, %v1063
  %v1071 = vadd.f32 %v1045, %v1067
  %v1072 = vadd.f32 %v1046, %v1063
  %v1073 = vadd.f32 %v1047, %v1067
  %v1074 = vadd.f32 %v1048, %v1063
  %v1075 = vadd.f32 %v1049, %v1067
  %v1076 = vmax.f32 %v1068, 0.0
  %v1077 = vmax.f32 %v1069, 0.0
  %v1078 = vmax.f32 %v1070, 0.0
  %v1079 = vmax.f32 %v1071, 0.0
  %v1080 = vmax.f32 %v1072, 0.0
  %v1081 = vmax.f32 %v1073, 0.0
  %v1082 = vmax.f32 %v1074, 0.0
  %v1083 = vmax.f32 %v1075, 0.0
  %v1084 = vand.u32 2147483647, %v1068
  %v1085 = vand.u32 2147483647, %v1069
  %v1086 = vand.u32 2147483647, %v1070
  %v1087 = vand.u32 2147483647, %v1071
  %v1088 = vand.u32 2147483647, %v1072
  %v1089 = vand.u32 2147483647, %v1073
  %v1090 = vand.u32 2147483647, %v1074
  %v1091 = vand.u32 2147483647, %v1075
  %v1092 = vsub.f32 0.0, %v1084
  %v1093 = vsub.f32 0.0, %v1085
  %v1094 = vsub.f32 0.0, %v1086
  %v1095 = vsub.f32 0.0, %v1087
  %v1096 = vsub.f32 0.0, %v1088
  %v1097 = vsub.f32 0.0, %v1089
  %v1098 = vsub.f32 0.0, %v1090
  %v1099 = vsub.f32 0.0, %v1091
  %v1100 = vmul.f32 %v1092, 1.442695
  %v1101 = vpow.pop %v1100
  %v1102 = vmul.f32 %v1093, 1.442695
  %v1103 = vpow.pop %v1102
  %v1104 = vmul.f32 %v1094, 1.442695
  %v1105 = vpow.pop %v1104
  %v1106 = vmul.f32 %v1095, 1.442695
  %v1107 = vpow.pop %v1106
  %v1108 = vmul.f32 %v1096, 1.442695
  %v1109 = vpow.pop %v1108
  %v1110 = vmul.f32 %v1097, 1.442695
  %v1111 = vpow.pop %v1110
  %v1112 = vmul.f32 %v1098, 1.442695
  %v1113 = vpow.pop %v1112
  %v1114 = vmul.f32 %v1099, 1.442695
  %v1115 = vpow.pop %v1114
  %v1116 = vadd.f32 %v1101, 1.0
  %v1117 = vlog2.pop %v1116
  %v1118 = vmul.f32 %v1117, 0.6931472
  %v1119 = vmul.f32 -0.5, %v1101
  %v1120 = vadd.f32 %v1119, 1.0
  %v1121 = vmul.f32 %v1120, %v1101
  %v1122 = vand.u32 2147483647, %v1101
  %vm1123 = vcmp.lt.f32.partialorder %v1122, 0.0004427343
  %v1124 = vsel %vm1123, %v1121, %v1118
  %v1125 = vadd.f32 %v1103, 1.0
  %v1126 = vlog2.pop %v1125
  %v1127 = vmul.f32 %v1126, 0.6931472
  %v1128 = vmul.f32 -0.5, %v1103
  %v1129 = vadd.f32 %v1128, 1.0
  %v1130 = vmul.f32 %v1129, %v1103
  %v1131 = vand.u32 2147483647, %v1103
  %vm1132 = vcmp.lt.f32.partialorder %v1131, 0.0004427343
  %v1133 = vsel %vm1132, %v1130, %v1127
  %v1134 = vadd.f32 %v1105, 1.0
  %v1135 = vlog2.pop %v1134
  %v1136 = vmul.f32 %v1135, 0.6931472
  %v1137 = vmul.f32 -0.5, %v1105
  %v1138 = vadd.f32 %v1137, 1.0
  %v1139 = vmul.f32 %v1138, %v1105
  %v1140 = vand.u32 2147483647, %v1105
  %vm1141 = vcmp.lt.f32.partialorder %v1140, 0.0004427343
  %v1142 = vsel %vm1141, %v1139, %v1136
  %v1143 = vadd.f32 %v1107, 1.0
  %v1144 = vlog2.pop %v1143
  %v1145 = vmul.f32 %v1144, 0.6931472
  %v1146 = vmul.f32 -0.5, %v1107
  %v1147 = vadd.f32 %v1146, 1.0
  %v1148 = vmul.f32 %v1147, %v1107
  %v1149 = vand.u32 2147483647, %v1107
  %vm1150 = vcmp.lt.f32.partialorder %v1149, 0.0004427343
  %v1151 = vsel %vm1150, %v1148, %v1145
  %v1152 = vadd.f32 %v1109, 1.0
  %v1153 = vlog2.pop %v1152
  %v1154 = vmul.f32 %v1153, 0.6931472
  %v1155 = vmul.f32 -0.5, %v1109
  %v1156 = vadd.f32 %v1155, 1.0
  %v1157 = vmul.f32 %v1156, %v1109
  %v1158 = vand.u32 2147483647, %v1109
  %vm1159 = vcmp.lt.f32.partialorder %v1158, 0.0004427343
  %v1160 = vsel %vm1159, %v1157, %v1154
  %v1161 = vadd.f32 %v1111, 1.0
  %v1162 = vlog2.pop %v1161
  %v1163 = vmul.f32 %v1162, 0.6931472
  %v1164 = vmul.f32 -0.5, %v1111
  %v1165 = vadd.f32 %v1164, 1.0
  %v1166 = vmul.f32 %v1165, %v1111
  %v1167 = vand.u32 2147483647, %v1111
  %vm1168 = vcmp.lt.f32.partialorder %v1167, 0.0004427343
  %v1169 = vsel %vm1168, %v1166, %v1163
  %v1170 = vadd.f32 %v1113, 1.0
  %v1171 = vlog2.pop %v1170
  %v1172 = vmul.f32 %v1171, 0.6931472
  %v1173 = vmul.f32 -0.5, %v1113
  %v1174 = vadd.f32 %v1173, 1.0
  %v1175 = vmul.f32 %v1174, %v1113
  %v1176 = vand.u32 2147483647, %v1113
  %vm1177 = vcmp.lt.f32.partialorder %v1176, 0.0004427343
  %v1178 = vsel %vm1177, %v1175, %v1172
  %v1179 = vadd.f32 %v1115, 1.0
  %v1180 = vlog2.pop %v1179
  %v1181 = vmul.f32 %v1180, 0.6931472
  %v1182 = vmul.f32 -0.5, %v1115
  %v1183 = vadd.f32 %v1182, 1.0
  %v1184 = vmul.f32 %v1183, %v1115
  %v1185 = vand.u32 2147483647, %v1115
  %vm1186 = vcmp.lt.f32.partialorder %v1185, 0.0004427343
  %v1187 = vsel %vm1186, %v1184, %v1181
  %v1188 = vadd.f32 %v1076, %v1124
  %v1189 = vadd.f32 %v1077, %v1133
  %v1190 = vadd.f32 %v1078, %v1142
  %v1191 = vadd.f32 %v1079, %v1151
  %v1192 = vadd.f32 %v1080, %v1160
  %v1193 = vadd.f32 %v1081, %v1169
  %v1194 = vadd.f32 %v1082, %v1178
  %v1195 = vadd.f32 %v1083, %v1187
  %v1196 = vtanh.pop %v1188
  %v1197 = vtanh.pop %v1189
  %v1198 = vtanh.pop %v1190
  %v1199 = vtanh.pop %v1191
  %v1200 = vtanh.pop %v1192
  %v1201 = vtanh.pop %v1193
  %v1202 = vtanh.pop %v1194
  %v1203 = vtanh.pop %v1195
  %v1204 = vmul.f32 %v1068, %v1196
  %v1205 = vmul.f32 %v1069, %v1197
  %v1206 = vmul.f32 %v1070, %v1198
  %v1207 = vmul.f32 %v1071, %v1199
  %v1208 = vmul.f32 %v1072, %v1200
  %v1209 = vmul.f32 %v1073, %v1201
  %v1210 = vmul.f32 %v1074, %v1202
  %v1211 = vmul.f32 %v1075, %v1203
  %1212 = vst [vmem:[%s5] sm:$0xff] %v1204
  %1213 = vst [vmem:[%s5 + $0x8] sm:$0xff] %v1205
  %1214 = vst [vmem:[%s5 + $0x10] sm:$0xff] %v1206
  %1215 = vst [vmem:[%s5 + $0x18] sm:$0xff] %v1207
  %1216 = vst [vmem:[%s5 + $0x20] sm:$0xff] %v1208
  %1217 = vst [vmem:[%s5 + $0x28] sm:$0xff] %v1209
  %1218 = vst [vmem:[%s5 + $0x30] sm:$0xff] %v1210
  %1219 = vst [vmem:[%s5 + $0x38] sm:$0xff] %v1211
  // Predicated region
  $region22: #{block_pallas.1} parent=0 // pred_check
    _
  $region23: #{block_pallas.1} parent=0 // pred_check_branch
    %1221 = sbr.rel (0) target = $region25
  $region24: #{block_pallas.1} parent=0 // pred_region
    _
  $region25: #{block_pallas.1} parent=0 // pred_fallthru
    _
  // Predicated region
  $region26: #{block_pallas.1} parent=0 // pred_check
    _
  $region27: #{block_pallas.1} parent=0 // pred_check_branch
    %1223 = sbr.rel (0) target = $region29
  $region28: #{block_pallas.1} parent=0 // pred_region
    _
  $region29: #{block_pallas.1} parent=0 // pred_fallthru
    _

</llo_original>
